<compile_context>
chip_gen: v7x
topology: tpu7x:2x2x1
jax: 0.10.0
libtpu: 0.0.40
codegen_flags: <defaults>
</compile_context>

<pallas_src>
import functools

import jax
import jax.numpy as jnp
import numpy as np
from jax import lax
from jax.experimental import pallas as pl
from jax.experimental.pallas import tpu as pltpu


def _make_divisible(v, divisor, min_value=None):
    if min_value is None:
        min_value = divisor
    new_v = max(min_value, int(v + divisor / 2) // divisor * divisor)
    if new_v < 0.9 * v:
        new_v += divisor
    return new_v


def _spatial_se_kernel(x_ref, w1_ref, b1_ref, w2t_ref, b2_ref, o_ref, *, C, HW):
    """One grid step: `bt` images, each a lane-dense row of C*HW elements."""
    # AdaptiveAvgPool1d(1): mean over C.  Accumulate segment-by-segment in f32
    # so no f32 copy of the whole block stays live.
    acc = x_ref[:, 0:HW].astype(jnp.float32)
    for c in range(1, C):
        acc = acc + x_ref[:, c * HW:(c + 1) * HW].astype(jnp.float32)
    avg = acc * (1.0 / C)                                          # (bt, HW) f32

    # fc1 (Conv1d k=1): contract over HW with the lane-dense (S, HW) weight.
    z = lax.dot_general(avg, w1_ref[...],
                        dimension_numbers=(((1,), (1,)), ((), ())),
                        preferred_element_type=jnp.float32)        # (bt, S)
    z = jnp.maximum(z + b1_ref[...], 0.0)                          # ReLU
    # fc2 (Conv1d k=1): (bt, S) @ (S, HW).
    s = jnp.dot(z, w2t_ref[...],
                preferred_element_type=jnp.float32) + b2_ref[...]  # (bt, HW)
    # Hardsigmoid: clip((s + 3) / 6, 0, 1).
    scale = jnp.clip((s + 3.0) * (1.0 / 6.0), 0.0, 1.0)
    scale = scale.astype(o_ref.dtype)
    # Apply per channel segment; every slice is a static lane range (HW is a
    # multiple of 128 in the intended use) so the stores are fully dense.
    for c in range(C):
        sl = slice(c * HW, (c + 1) * HW)
        o_ref[:, sl] = x_ref[:, sl] * scale


def _choose_bt(B, row_bytes, sublane, target_bytes, min_programs=4):
    """Images per block: <= ~target_bytes of x per step; >= min_programs grid
    steps when the batch allows (>= 2 per TensorCore on v7x); row count is
    sublane-aligned or covers the whole batch (Mosaic tiling rule)."""
    bt = max(1, int(target_bytes // row_bytes))
    bt = min(bt, B)
    if B >= min_programs * sublane:
        bt = min(bt, B // min_programs)
    if bt < B:
        bt = min(B, max((bt // sublane) * sublane, sublane))
    return bt


def spatial_se(x_nchw, w1, b1, w2, b2, *, target_block_bytes=6 << 20):
    """Pallas TPU forward pass of Spatial_SE.  w1: (S, HW), w2: (HW, S)."""
    B, C, H, W = x_nchw.shape
    HW = H * W
    S = w1.shape[0]
    CHW = C * HW

    # Free reshapes only -- no HBM transpose of the activation tensor.
    x = x_nchw.reshape(B, CHW)                  # lane-dense rows, one per image
    w1r = w1                                    # (S, HW), already lane-dense
    w2t = jnp.transpose(w2)                     # (S, HW), tiny one-time transpose
    b1r = b1.reshape(1, S)
    b2r = b2.reshape(1, HW)

    itemsize = x.dtype.itemsize
    sublane = max(8, 32 // itemsize)            # 8 (f32) / 16 (bf16) / 32 (int8)
    row_bytes = CHW * itemsize
    bt = _choose_bt(B, row_bytes, sublane, target_block_bytes)
    grid = (pl.cdiv(B, bt),)

    # VMEM budget: in + out blocks double-buffered, weights/biases, f32 temps.
    block_bytes = bt * row_bytes
    aux_bytes = 2 * (2 * S * HW + S + HW) * 4
    temp_bytes = 4 * bt * HW * 4
    vmem_limit = 4 * block_bytes + aux_bytes + temp_bytes + (2 << 20)
    vmem_limit = int(min(max(vmem_limit, 32 << 20), 48 << 20))
    # TODO(synk): for extreme C*HW (rows of several MiB) the sublane-aligned
    # block could exceed this 48 MiB cap; such shapes would need C-axis tiling.

    cost = pl.CostEstimate(
        flops=4 * B * S * HW + 3 * B * CHW,
        transcendentals=0,
        bytes_accessed=2 * B * CHW * itemsize)

    out = pl.pallas_call(
        functools.partial(_spatial_se_kernel, C=C, HW=HW),
        out_shape=jax.ShapeDtypeStruct((B, CHW), x.dtype),
        grid_spec=pltpu.PrefetchScalarGridSpec(
            num_scalar_prefetch=0,
            grid=grid,
            in_specs=[
                pl.BlockSpec((bt, CHW), lambda i: (i, 0)),   # x
                pl.BlockSpec((S, HW), lambda i: (0, 0)),     # fc1 weight (S, HW)
                pl.BlockSpec((1, S), lambda i: (0, 0)),      # fc1 bias
                pl.BlockSpec((S, HW), lambda i: (0, 0)),     # fc2 weight^T (S, HW)
                pl.BlockSpec((1, HW), lambda i: (0, 0)),     # fc2 bias
            ],
            out_specs=pl.BlockSpec((bt, CHW), lambda i: (i, 0)),
        ),
        compiler_params=pltpu.CompilerParams(
            dimension_semantics=("parallel",),
            vmem_limit_bytes=vmem_limit),
        cost_estimate=cost,
    )(x, w1r, b1r, w2t, b2r)

    return out.reshape(B, C, H, W)


def spatial_se_ref(x_nchw, w1, b1, w2, b2):
    """Pure-JAX reference for correctness checking."""
    B, C, H, W = x_nchw.shape
    HW = H * W
    x = jnp.transpose(x_nchw.reshape(B, C, HW), (0, 2, 1))      # (B, HW, C)
    avg = jnp.mean(x, axis=-1, keepdims=True)                   # (B, HW, 1)
    z = jnp.einsum('sh,bho->bso', w1, avg) + b1[None, :, None]
    z = jnp.maximum(z, 0.0)
    s = jnp.einsum('hs,bso->bho', w2, z) + b2[None, :, None]
    scale = jnp.clip((s + 3.0) / 6.0, 0.0, 1.0)
    y = x * scale
    return jnp.transpose(y, (0, 2, 1)).reshape(B, C, H, W)


if __name__ == "__main__":
    # Module is constructed with in_channels = H*W (the rearranged "channel" axis).
    B, C, H, W = 2, 4, 16, 16
    HW = H * W                                 # 256
    S = _make_divisible(HW // 64, 8)           # squeeze_channels = 8

    key = jax.random.PRNGKey(0)
    kx, k1, k2, k3, k4 = jax.random.split(key, 5)
    x = jax.random.normal(kx, (B, C, H, W), dtype=jnp.float32)

    # Deterministic Conv1d(k=1) parameter init (uniform(-1/sqrt(fan_in), ...)).
    bound1 = 1.0 / np.sqrt(HW)
    w1 = jax.random.uniform(k1, (S, HW), jnp.float32, -bound1, bound1)
    b1 = jax.random.uniform(k2, (S,),    jnp.float32, -bound1, bound1)
    bound2 = 1.0 / np.sqrt(S)
    w2 = jax.random.uniform(k3, (HW, S), jnp.float32, -bound2, bound2)
    b2 = jax.random.uniform(k4, (HW,),   jnp.float32, -bound2, bound2)

    y = jax.block_until_ready(spatial_se(x, w1, b1, w2, b2))

    y_ref = spatial_se_ref(x, w1, b1, w2, b2)
    np.testing.assert_allclose(np.asarray(y), np.asarray(y_ref),
                               rtol=1e-5, atol=1e-5)
    print("KERNEL_OK")
</pallas_src>

<mosaic_0001>
module attributes {stable_mosaic.version = 11 : i64} {
  func.func @_spatial_se_kernel(%arg0: i32, %arg1: memref<2x1024xf32, #tpu.memory_space<vmem>>, %arg2: memref<8x256xf32, #tpu.memory_space<vmem>>, %arg3: memref<1x8xf32, #tpu.memory_space<vmem>>, %arg4: memref<8x256xf32, #tpu.memory_space<vmem>>, %arg5: memref<1x256xf32, #tpu.memory_space<vmem>>, %arg6: memref<2x1024xf32, #tpu.memory_space<vmem>>) attributes {dimension_semantics = [#tpu.dimension_semantics<parallel>], iteration_bounds = array<i64: 1>, scalar_prefetch = 0 : i64, scratch_operands = 0 : i64, tpu.core_type = #tpu.core_type<tc>, window_params = [{transform_indices = @transform_0, window_bounds = array<i64: 2, 1024>}, {pipeline_mode = #tpu.pipeline_mode<synchronous>, transform_indices = @transform_1, window_bounds = array<i64: 8, 256>}, {pipeline_mode = #tpu.pipeline_mode<synchronous>, transform_indices = @transform_2, window_bounds = array<i64: 1, 8>}, {pipeline_mode = #tpu.pipeline_mode<synchronous>, transform_indices = @transform_3, window_bounds = array<i64: 8, 256>}, {pipeline_mode = #tpu.pipeline_mode<synchronous>, transform_indices = @transform_4, window_bounds = array<i64: 1, 256>}, {transform_indices = @transform_5, window_bounds = array<i64: 2, 1024>}]} {
    %c0 = arith.constant 0 : index
    %c0_0 = arith.constant 0 : index
    %0 = vector.load %arg1[%c0, %c0_0] : memref<2x1024xf32, #tpu.memory_space<vmem>>, vector<2x256xf32>
    %c0_1 = arith.constant 0 : index
    %c256 = arith.constant 256 : index
    %1 = vector.load %arg1[%c0_1, %c256] : memref<2x1024xf32, #tpu.memory_space<vmem>>, vector<2x256xf32>
    %2 = arith.addf %0, %1 : vector<2x256xf32>
    %c0_2 = arith.constant 0 : index
    %c512 = arith.constant 512 : index
    %3 = vector.load %arg1[%c0_2, %c512] : memref<2x1024xf32, #tpu.memory_space<vmem>>, vector<2x256xf32>
    %4 = arith.addf %2, %3 : vector<2x256xf32>
    %c0_3 = arith.constant 0 : index
    %c768 = arith.constant 768 : index
    %5 = vector.load %arg1[%c0_3, %c768] : memref<2x1024xf32, #tpu.memory_space<vmem>>, vector<2x256xf32>
    %6 = arith.addf %4, %5 : vector<2x256xf32>
    %cst = arith.constant 2.500000e-01 : f32
    %7 = vector.broadcast %cst : f32 to vector<2x256xf32>
    %8 = arith.mulf %6, %7 : vector<2x256xf32>
    %c0_4 = arith.constant 0 : index
    %c0_5 = arith.constant 0 : index
    %9 = vector.load %arg2[%c0_4, %c0_5] : memref<8x256xf32, #tpu.memory_space<vmem>>, vector<8x256xf32>
    %cst_6 = arith.constant dense<0.000000e+00> : vector<2x8xf32>
    %10 = tpu.matmul %8, %9, %cst_6 {dimension_numbers = #tpu.dot_dimension_numbers<[1], [1], [0], [0], [0, 0, 1, 0], [], []>} : vector<2x256xf32>, vector<8x256xf32>, vector<2x8xf32> -> vector<2x8xf32>
    %c0_7 = arith.constant 0 : index
    %c0_8 = arith.constant 0 : index
    %11 = vector.load %arg3[%c0_7, %c0_8] : memref<1x8xf32, #tpu.memory_space<vmem>>, vector<1x8xf32>
    %12 = vector.broadcast %11 : vector<1x8xf32> to vector<2x8xf32>
    %13 = arith.addf %10, %12 : vector<2x8xf32>
    %cst_9 = arith.constant 0.000000e+00 : f32
    %14 = vector.broadcast %cst_9 : f32 to vector<2x8xf32>
    %15 = arith.maximumf %13, %14 : vector<2x8xf32>
    %c0_10 = arith.constant 0 : index
    %c0_11 = arith.constant 0 : index
    %16 = vector.load %arg4[%c0_10, %c0_11] : memref<8x256xf32, #tpu.memory_space<vmem>>, vector<8x256xf32>
    %cst_12 = arith.constant dense<0.000000e+00> : vector<2x256xf32>
    %17 = tpu.matmul %15, %16, %cst_12 {dimension_numbers = #tpu.dot_dimension_numbers<[1], [0], [0], [1], [0, 0, 1, 1], [], []>} : vector<2x8xf32>, vector<8x256xf32>, vector<2x256xf32> -> vector<2x256xf32>
    %c0_13 = arith.constant 0 : index
    %c0_14 = arith.constant 0 : index
    %18 = vector.load %arg5[%c0_13, %c0_14] : memref<1x256xf32, #tpu.memory_space<vmem>>, vector<1x256xf32>
    %19 = vector.broadcast %18 : vector<1x256xf32> to vector<2x256xf32>
    %20 = arith.addf %17, %19 : vector<2x256xf32>
    %cst_15 = arith.constant 3.000000e+00 : f32
    %21 = vector.broadcast %cst_15 : f32 to vector<2x256xf32>
    %22 = arith.addf %20, %21 : vector<2x256xf32>
    %cst_16 = arith.constant 0.166666672 : f32
    %23 = vector.broadcast %cst_16 : f32 to vector<2x256xf32>
    %24 = arith.mulf %22, %23 : vector<2x256xf32>
    %cst_17 = arith.constant 0.000000e+00 : f32
    %cst_18 = arith.constant 1.000000e+00 : f32
    %25 = vector.broadcast %cst_17 : f32 to vector<2x256xf32>
    %26 = arith.maximumf %25, %24 : vector<2x256xf32>
    %27 = vector.broadcast %cst_18 : f32 to vector<2x256xf32>
    %28 = arith.minimumf %27, %26 : vector<2x256xf32>
    %c0_19 = arith.constant 0 : index
    %c0_20 = arith.constant 0 : index
    %29 = vector.load %arg1[%c0_19, %c0_20] : memref<2x1024xf32, #tpu.memory_space<vmem>>, vector<2x256xf32>
    %30 = arith.mulf %29, %28 : vector<2x256xf32>
    %c0_21 = arith.constant 0 : index
    %c0_22 = arith.constant 0 : index
    %31 = vector.load %arg6[%c0_21, %c0_22] : memref<2x1024xf32, #tpu.memory_space<vmem>>, vector<2x256xf32>
    tpu.vector_store %arg6[%c0_21, %c0_22], %30 {strides = array<i32>} : memref<2x1024xf32, #tpu.memory_space<vmem>>, vector<2x256xf32>,
    %c0_23 = arith.constant 0 : index
    %c256_24 = arith.constant 256 : index
    %32 = vector.load %arg1[%c0_23, %c256_24] : memref<2x1024xf32, #tpu.memory_space<vmem>>, vector<2x256xf32>
    %33 = arith.mulf %32, %28 : vector<2x256xf32>
    %c0_25 = arith.constant 0 : index
    %c256_26 = arith.constant 256 : index
    %34 = vector.load %arg6[%c0_25, %c256_26] : memref<2x1024xf32, #tpu.memory_space<vmem>>, vector<2x256xf32>
    tpu.vector_store %arg6[%c0_25, %c256_26], %33 {strides = array<i32>} : memref<2x1024xf32, #tpu.memory_space<vmem>>, vector<2x256xf32>,
    %c0_27 = arith.constant 0 : index
    %c512_28 = arith.constant 512 : index
    %35 = vector.load %arg1[%c0_27, %c512_28] : memref<2x1024xf32, #tpu.memory_space<vmem>>, vector<2x256xf32>
    %36 = arith.mulf %35, %28 : vector<2x256xf32>
    %c0_29 = arith.constant 0 : index
    %c512_30 = arith.constant 512 : index
    %37 = vector.load %arg6[%c0_29, %c512_30] : memref<2x1024xf32, #tpu.memory_space<vmem>>, vector<2x256xf32>
    tpu.vector_store %arg6[%c0_29, %c512_30], %36 {strides = array<i32>} : memref<2x1024xf32, #tpu.memory_space<vmem>>, vector<2x256xf32>,
    %c0_31 = arith.constant 0 : index
    %c768_32 = arith.constant 768 : index
    %38 = vector.load %arg1[%c0_31, %c768_32] : memref<2x1024xf32, #tpu.memory_space<vmem>>, vector<2x256xf32>
    %39 = arith.mulf %38, %28 : vector<2x256xf32>
    %c0_33 = arith.constant 0 : index
    %c768_34 = arith.constant 768 : index
    %40 = vector.load %arg6[%c0_33, %c768_34] : memref<2x1024xf32, #tpu.memory_space<vmem>>, vector<2x256xf32>
    tpu.vector_store %arg6[%c0_33, %c768_34], %39 {strides = array<i32>} : memref<2x1024xf32, #tpu.memory_space<vmem>>, vector<2x256xf32>,
    return
  }
  func.func @transform_0(%arg0: i32) -> (i32, i32) {
    %c0_i32 = arith.constant 0 : i32
    %c0_i32_0 = arith.constant 0 : i32
    return %arg0, %c0_i32 : i32, i32
  }
  func.func @transform_1(%arg0: i32) -> (i32, i32) {
    %c0_i32 = arith.constant 0 : i32
    %c0_i32_0 = arith.constant 0 : i32
    %c0_i32_1 = arith.constant 0 : i32
    return %c0_i32, %c0_i32_0 : i32, i32
  }
  func.func @transform_2(%arg0: i32) -> (i32, i32) {
    %c0_i32 = arith.constant 0 : i32
    %c0_i32_0 = arith.constant 0 : i32
    %c0_i32_1 = arith.constant 0 : i32
    return %c0_i32, %c0_i32_0 : i32, i32
  }
  func.func @transform_3(%arg0: i32) -> (i32, i32) {
    %c0_i32 = arith.constant 0 : i32
    %c0_i32_0 = arith.constant 0 : i32
    %c0_i32_1 = arith.constant 0 : i32
    return %c0_i32, %c0_i32_0 : i32, i32
  }
  func.func @transform_4(%arg0: i32) -> (i32, i32) {
    %c0_i32 = arith.constant 0 : i32
    %c0_i32_0 = arith.constant 0 : i32
    %c0_i32_1 = arith.constant 0 : i32
    return %c0_i32, %c0_i32_0 : i32, i32
  }
  func.func @transform_5(%arg0: i32) -> (i32, i32) {
    %c0_i32 = arith.constant 0 : i32
    %c0_i32_0 = arith.constant 0 : i32
    return %arg0, %c0_i32 : i32, i32
  }
}

</mosaic_0001>

<llo_original>
// kernel: tpu_custom_call.1
$region0: #{tpu_custom_call.1}
  #allocation0 [shape = 'u32[]', space=smem, size = 0x4, offset = 0x4, fixed_abs, tag = 'smem constant byte address 0x4 - core index']
  #allocation1 [shape = 'u32[144,128]{1,0:T(1,128)}', space=vmem, size = 0x12000, scoped, tag = 'internal scratch']
  %s0 = inlined_call_operand.hbm [shape: f32[2,1024], index: 0, kind: input, shape index: {}]
  %s1 = inlined_call_operand.hbm [shape: f32[8,256], index: 1, kind: input, shape index: {}]
  %s2 = inlined_call_operand.vmem [shape: f32[1,8], index: 2, kind: input, shape index: {}]
  %s3 = inlined_call_operand.hbm [shape: f32[8,256], index: 3, kind: input, shape index: {}]
  %s4 = inlined_call_operand.vmem [shape: f32[1,256], index: 4, kind: input, shape index: {}]
  %s5 = inlined_call_operand.hbm [shape: f32[2,1024], index: 5, kind: output, shape index: {}]
  %s6 = sld [smem:[#allocation0]]
  $region42: #{tpu_custom_call.1} parent=0
    _
  %s8 = ssub.s32 1, %s6
  %s9 = scalar_select 0, %s8, %s6
  $region1: #{tpu_custom_call.1} parent=0
    #allocation2 [shape = 'u8[8192]{0}', space=vmem, size = 0x2000, scoped, tag = 'input window, operand 0, single buffered']
    #allocation3 [shape = 's32[1]{0}', space=sflag, size = 0x4, scoped, tag = 'scoped memory for tpu_custom_call.1']
    #allocation4 [shape = 's32[1]{0}', space=sflag, size = 0x4, scoped, tag = 'scoped memory for tpu_custom_call.1']
    #allocation5 [shape = 'u8[8192]{0}', space=vmem, size = 0x2000, scoped, tag = 'input window, operand 1, single buffered']
    #allocation6 [shape = 's32[1]{0}', space=sflag, size = 0x4, scoped, tag = 'scoped memory for tpu_custom_call.1']
    #allocation7 [shape = 'u8[8192]{0}', space=vmem, size = 0x2000, scoped, tag = 'input window, operand 3, single buffered']
    #allocation8 [shape = 'u8[8192]{0}', space=vmem, size = 0x2000, scoped, tag = 'output window, operand 0, single buffered']
    %10 = vsyncpa [#allocation3], 0
    %11 = vsyncpa [#allocation6], 0
    %12 = vsyncpa [#allocation4], 0
    // Predicated region
    $region2: #{tpu_custom_call.1} parent=1 // pred_check
      _
    $region3: #{tpu_custom_call.1} parent=1 // pred_check_branch
      %14 = sbr.rel (0) target = $region5
    $region4: #{tpu_custom_call.1} parent=1 // pred_region
      %s16 = ssub.s32 256, 256
      %17 = vsyncadd [#allocation3], %s16
      %s19 = sshll.u32 [#allocation2], 4
      %s20 = int_to_ptr.vmem [resolvable:$true] %s19
      %22 = dma.hbm_to_vmem [thread:$0]  %s0, 256, %s20, [#allocation3]
    $region5: #{tpu_custom_call.1} parent=1 // pred_fallthru
      _
    // Predicated region
    $region6: #{tpu_custom_call.1} parent=1 // pred_check
      _
    $region7: #{tpu_custom_call.1} parent=1 // pred_check_branch
      %24 = sbr.rel (0) target = $region9
    $region8: #{tpu_custom_call.1} parent=1 // pred_region
      %s26 = ssub.s32 256, 256
      %27 = vsyncadd [#allocation6], %s26
      %s29 = sshll.u32 [#allocation5], 4
      %s30 = int_to_ptr.vmem [resolvable:$true] %s29
      %32 = dma.hbm_to_vmem [thread:$0]  %s1, 256, %s30, [#allocation6]
    $region9: #{tpu_custom_call.1} parent=1 // pred_fallthru
      _
    // Predicated region
    $region10: #{tpu_custom_call.1} parent=1 // pred_check
      _
    $region11: #{tpu_custom_call.1} parent=1 // pred_check_branch
      %34 = sbr.rel (0) target = $region13
    $region12: #{tpu_custom_call.1} parent=1 // pred_region
      _
    $region13: #{tpu_custom_call.1} parent=1 // pred_fallthru
      _
    // Predicated region
    $region14: #{tpu_custom_call.1} parent=1 // pred_check
      _
    $region15: #{tpu_custom_call.1} parent=1 // pred_check_branch
      %36 = sbr.rel (0) target = $region17
    $region16: #{tpu_custom_call.1} parent=1 // pred_region
      %s38 = ssub.s32 256, 256
      %39 = vsyncadd [#allocation6], %s38
      %s41 = sshll.u32 [#allocation7], 4
      %s42 = int_to_ptr.vmem [resolvable:$true] %s41
      %44 = dma.hbm_to_vmem [thread:$0]  %s3, 256, %s42, [#allocation6]
    $region17: #{tpu_custom_call.1} parent=1 // pred_fallthru
      _
    // Predicated region
    $region18: #{tpu_custom_call.1} parent=1 // pred_check
      _
    $region19: #{tpu_custom_call.1} parent=1 // pred_check_branch
      %46 = sbr.rel (0) target = $region21
    $region20: #{tpu_custom_call.1} parent=1 // pred_region
      _
    $region21: #{tpu_custom_call.1} parent=1 // pred_fallthru
      _
    // Predicated region
    $region22: #{tpu_custom_call.1} parent=1 // pred_check
      _
    $region23: #{tpu_custom_call.1} parent=1 // pred_check_branch
      %48 = sbr.rel (0) target = $region25
    $region24: #{tpu_custom_call.1} parent=1 // pred_region
      %49 = dma.done [#allocation3], 256
    $region25: #{tpu_custom_call.1} parent=1 // pred_fallthru
      _
    // Predicated region
    $region26: #{tpu_custom_call.1} parent=1 // pred_check
      _
    $region27: #{tpu_custom_call.1} parent=1 // pred_check_branch
      %51 = sbr.rel (0) target = $region29
    $region28: #{tpu_custom_call.1} parent=1 // pred_region
      %52 = dma.done [#allocation6], 256
    $region29: #{tpu_custom_call.1} parent=1 // pred_fallthru
      _
    // Predicated region
    $region30: #{tpu_custom_call.1} parent=1 // pred_check
      _
    $region31: #{tpu_custom_call.1} parent=1 // pred_check_branch
      %54 = sbr.rel (0) target = $region33
    $region32: #{tpu_custom_call.1} parent=1 // pred_region
      %55 = dma.done [#allocation6], 256
    $region33: #{tpu_custom_call.1} parent=1 // pred_fallthru
      _
    %v56 = vld [vmem:[#allocation2] sm:$0xf]
    %v57 = vld [vmem:[#allocation2 + $0x4] sm:$0xf]
    %v58 = vadd.f32 %v56, %v57
    %v59 = vld [vmem:[#allocation2 + $0x8] sm:$0xf]
    %v60 = vadd.f32 %v58, %v59
    %v61 = vld [vmem:[#allocation2 + $0xc] sm:$0xf]
    %v62 = vadd.f32 %v60, %v61
    %v63 = vmul.f32 %v62, 0.25
    %v64 = vld [vmem:[#allocation5] sm:$0xff]
    %v65 = vld [vmem:[#allocation5 + $0x8] sm:$0xff]
    %v66 = vld [vmem:[%s2] sm:$0x1]
    %v68 = vlaneseq
    %v69 = vshrl.u32 %v68, 7
    %v70 = vsub.s32 0, %v69
    %v71 = vrot.slane %v66, %v70
    %v75 = vunpack.c.l.s4 1983009808
    %v76 = vunpack.c.0.s8 %v75
    %v77 = vlaneseq
    %v78 = vshrl.u32 %v77, 7
    %v79 = vsub.s32 %v76, %v78
    %v80 = vrot.slane %v63, %v79
    %v81 = vcombine.high %v80, %v80
    %84 = vmatprep.subr.mxu0 %v65
    %85 = vmatpush1.xpose.msra.mxu0 %v64
    %86 = vmatprep.subr.mxu0 0.0
    %87 = vmatpush1.xpose.msra.mxu0 0.0
    %88 = vmatprep.subr.mxu0 0.0
    %89 = vmatpush1.xpose.msra.mxu0 0.0
    %90 = vmatprep.subr.mxu0 0.0
    %91 = vmatpush1.xpose.msra.mxu0 0.0
    %92 = vmatprep.subr.mxu0 0.0
    %93 = vmatpush1.xpose.msra.mxu0 0.0
    %94 = vmatprep.subr.mxu0 0.0
    %95 = vmatpush1.xpose.msra.mxu0 0.0
    %96 = vmatprep.subr.mxu0 0.0
    %97 = vmatpush1.xpose.msra.mxu0 0.0
    %98 = vmatprep.subr.mxu0 0.0
    %99 = vmatpush1.xpose.msra.mxu0 0.0
    %100 = vmatprep.subr.mxu0 0.0
    %101 = vmatpush1.xpose.msra.mxu0 0.0
    %102 = vmatprep.subr.mxu0 0.0
    %103 = vmatpush1.xpose.msra.mxu0 0.0
    %104 = vmatprep.subr.mxu0 0.0
    %105 = vmatpush1.xpose.msra.mxu0 0.0
    %106 = vmatprep.subr.mxu0 0.0
    %107 = vmatpush1.xpose.msra.mxu0 0.0
    %108 = vmatprep.subr.mxu0 0.0
    %109 = vmatpush1.xpose.msra.mxu0 0.0
    %110 = vmatprep.subr.mxu0 0.0
    %111 = vmatpush1.xpose.msra.mxu0 0.0
    %112 = vmatprep.subr.mxu0 0.0
    %113 = vmatpush1.xpose.msra.mxu0 0.0
    %114 = vmatprep.subr.mxu0 0.0
    %115 = vmatpush1.xpose.msra.mxu0 0.0
    %116 = vmatprep.subr.mxu0 0.0
    %117 = vmatpush1.xpose.msra.mxu0 0.0
    %118 = vmatprep.subr.mxu0 0.0
    %119 = vmatpush1.xpose.msra.mxu0 0.0
    %120 = vmatprep.subr.mxu0 0.0
    %121 = vmatpush1.xpose.msra.mxu0 0.0
    %122 = vmatprep.subr.mxu0 0.0
    %123 = vmatpush1.xpose.msra.mxu0 0.0
    %124 = vmatprep.subr.mxu0 0.0
    %125 = vmatpush1.xpose.msra.mxu0 0.0
    %126 = vmatprep.subr.mxu0 0.0
    %127 = vmatpush1.xpose.msra.mxu0 0.0
    %128 = vmatprep.subr.mxu0 0.0
    %129 = vmatpush1.xpose.msra.mxu0 0.0
    %130 = vmatprep.subr.mxu0 0.0
    %131 = vmatpush1.xpose.msra.mxu0 0.0
    %132 = vmatprep.subr.mxu0 0.0
    %133 = vmatpush1.xpose.msra.mxu0 0.0
    %134 = vmatprep.subr.mxu0 0.0
    %135 = vmatpush1.xpose.msra.mxu0 0.0
    %136 = vmatprep.subr.mxu0 0.0
    %137 = vmatpush1.xpose.msra.mxu0 0.0
    %138 = vmatprep.subr.mxu0 0.0
    %139 = vmatpush1.xpose.msra.mxu0 0.0
    %140 = vmatprep.subr.mxu0 0.0
    %141 = vmatpush1.xpose.msra.mxu0 0.0
    %142 = vmatprep.subr.mxu0 0.0
    %143 = vmatpush1.xpose.msra.mxu0 0.0
    %144 = vmatprep.subr.mxu0 0.0
    %145 = vmatpush1.xpose.msra.mxu0 0.0
    %146 = vmatprep.subr.mxu0 0.0
    %147 = vmatpush1.xpose.msra.mxu0 0.0
    %148 = vmatprep.mubr.f32.mxu0 %v81
    %149 = vmatmul.mubr.f32.gmra.mrb[0].mxu0 %v80
    %v150 = vpop.f32.mrb[0].mxu0
    %v151 = vadd.f32 %v71, %v150
    %v152 = vpop.f32.mrb[0].mxu0
    %153 = vdwg.mxu0
    %v154 = vmax.f32 %v151, 0.0
    %v155 = vld [vmem:[#allocation7] sm:$0xff]
    %v156 = vld [vmem:[#allocation7 + $0x8] sm:$0xff]
    %v157 = vld [vmem:[%s4] sm:$0x3]
    %v159 = vlaneseq
    %v160 = vshrl.u32 %v159, 7
    %v161 = vsub.s32 0, %v160
    %v162 = vrot.slane %v157, %v161
    %v163 = vlaneseq
    %v164 = vshrl.u32 %v163, 7
    %v165 = vsub.s32 1, %v164
    %v166 = vrot.slane %v157, %v165
    %vm169 = vcmask 64512
    %v171 = vsel %vm169, %v154, 0
    %173 = vmatprep.subr.mxu0 %v156
    %174 = vmatpush1.msra.mxu0 %v155
    %175 = vmatprep.subr.mxu0 0.0
    %176 = vmatpush1.msra.mxu0 0.0
    %177 = vmatprep.subr.mxu0 0.0
    %178 = vmatpush1.msra.mxu0 0.0
    %179 = vmatprep.subr.mxu0 0.0
    %180 = vmatpush1.msra.mxu0 0.0
    %181 = vmatprep.subr.mxu0 0.0
    %182 = vmatpush1.msra.mxu0 0.0
    %183 = vmatprep.subr.mxu0 0.0
    %184 = vmatpush1.msra.mxu0 0.0
    %185 = vmatprep.subr.mxu0 0.0
    %186 = vmatpush1.msra.mxu0 0.0
    %187 = vmatprep.subr.mxu0 0.0
    %188 = vmatpush1.msra.mxu0 0.0
    %189 = vmatprep.subr.mxu0 0.0
    %190 = vmatpush1.msra.mxu0 0.0
    %191 = vmatprep.subr.mxu0 0.0
    %192 = vmatpush1.msra.mxu0 0.0
    %193 = vmatprep.subr.mxu0 0.0
    %194 = vmatpush1.msra.mxu0 0.0
    %195 = vmatprep.subr.mxu0 0.0
    %196 = vmatpush1.msra.mxu0 0.0
    %197 = vmatprep.subr.mxu0 0.0
    %198 = vmatpush1.msra.mxu0 0.0
    %199 = vmatprep.subr.mxu0 0.0
    %200 = vmatpush1.msra.mxu0 0.0
    %201 = vmatprep.subr.mxu0 0.0
    %202 = vmatpush1.msra.mxu0 0.0
    %203 = vmatprep.subr.mxu0 0.0
    %204 = vmatpush1.msra.mxu0 0.0
    %205 = vmatprep.subr.mxu0 0.0
    %206 = vmatpush1.msra.mxu0 0.0
    %207 = vmatprep.subr.mxu0 0.0
    %208 = vmatpush1.msra.mxu0 0.0
    %209 = vmatprep.subr.mxu0 0.0
    %210 = vmatpush1.msra.mxu0 0.0
    %211 = vmatprep.subr.mxu0 0.0
    %212 = vmatpush1.msra.mxu0 0.0
    %213 = vmatprep.subr.mxu0 0.0
    %214 = vmatpush1.msra.mxu0 0.0
    %215 = vmatprep.subr.mxu0 0.0
    %216 = vmatpush1.msra.mxu0 0.0
    %217 = vmatprep.subr.mxu0 0.0
    %218 = vmatpush1.msra.mxu0 0.0
    %219 = vmatprep.subr.mxu0 0.0
    %220 = vmatpush1.msra.mxu0 0.0
    %221 = vmatprep.subr.mxu0 0.0
    %222 = vmatpush1.msra.mxu0 0.0
    %223 = vmatprep.subr.mxu0 0.0
    %224 = vmatpush1.msra.mxu0 0.0
    %225 = vmatprep.subr.mxu0 0.0
    %226 = vmatpush1.msra.mxu0 0.0
    %227 = vmatprep.subr.mxu0 0.0
    %228 = vmatpush1.msra.mxu0 0.0
    %229 = vmatprep.subr.mxu0 0.0
    %230 = vmatpush1.msra.mxu0 0.0
    %231 = vmatprep.subr.mxu0 0.0
    %232 = vmatpush1.msra.mxu0 0.0
    %233 = vmatprep.subr.mxu0 0.0
    %234 = vmatpush1.msra.mxu0 0.0
    %235 = vmatprep.subr.mxu0 0.0
    %236 = vmatpush1.msra.mxu0 0.0
    %237 = vmatprep.mubr.f32.mxu0 0.0
    %238 = vmatmul.mubr.f32.gmra.mrb[0].mxu0 %v171
    %v239 = vpop.f32.mrb[0].mxu0
    %v240 = vadd.f32 %v162, %v239
    %v241 = vpop.f32.mrb[0].mxu0
    %v242 = vadd.f32 %v166, %v241
    %243 = vdwg.mxu0
    %v244 = vadd.f32 %v240, 3.0
    %v245 = vadd.f32 %v242, 3.0
    %v246 = vmul.f32 %v244, 0.16666667
    %v247 = vmul.f32 %v245, 0.16666667
    %v248 = vmax.f32 %v246, 0.0
    %v249 = vmax.f32 %v247, 0.0
    %v250 = vmin.f32 %v248, 1.0
    %v251 = vmin.f32 %v249, 1.0
    %v254 = vcombine.low %v250, %v251
    %v256 = vunpack.c.l.s4 1983009808
    %v257 = vunpack.c.0.s8 %v256
    %v258 = vlaneseq
    %v259 = vshrl.u32 %v258, 7
    %v260 = vsub.s32 %v257, %v259
    %v261 = vrot.slane %v254, %v260
    %v263 = vmul.f32 %v56, %v261
    %264 = vst [vmem:[#allocation8] sm:$0xf] %v263
    %v265 = vld [vmem:[#allocation2 + $0x4] sm:$0xf]
    %v266 = vmul.f32 %v265, %v261
    %267 = vst [vmem:[#allocation8 + $0x4] sm:$0xf] %v266
    %v268 = vld [vmem:[#allocation2 + $0x8] sm:$0xf]
    %v269 = vmul.f32 %v268, %v261
    %270 = vst [vmem:[#allocation8 + $0x8] sm:$0xf] %v269
    %v271 = vld [vmem:[#allocation2 + $0xc] sm:$0xf]
    %v272 = vmul.f32 %v271, %v261
    %273 = vst [vmem:[#allocation8 + $0xc] sm:$0xf] %v272
    // Predicated region
    $region34: #{tpu_custom_call.1} parent=1 // pred_check
      _
    $region35: #{tpu_custom_call.1} parent=1 // pred_check_branch
      %275 = sbr.rel (0) target = $region37
    $region36: #{tpu_custom_call.1} parent=1 // pred_region
      %s277 = ssub.s32 256, 256
      %278 = vsyncadd [#allocation4], %s277
      %s280 = sshll.u32 [#allocation8], 4
      %s281 = int_to_ptr.vmem [resolvable:$true] %s280
      %283 = dma.vmem_to_hbm [thread:$0]  %s281, 256, %s5, [#allocation4]
    $region37: #{tpu_custom_call.1} parent=1 // pred_fallthru
      _
    // Predicated region
    $region38: #{tpu_custom_call.1} parent=1 // pred_check
      _
    $region39: #{tpu_custom_call.1} parent=1 // pred_check_branch
      %285 = sbr.rel (0) target = $region41
    $region40: #{tpu_custom_call.1} parent=1 // pred_region
      %286 = dma.done [#allocation4], 256
    $region41: #{tpu_custom_call.1} parent=1 // pred_fallthru
      _
    %287 = vsyncpa [#allocation3], 1
    %288 = vsyncpa [#allocation6], 1
    %289 = vsyncpa [#allocation4], 1

</llo_original>
